<compile_context>
chip_gen: v5e
topology: v5e:2x2
jax: 0.10.0
libtpu: 0.0.40
codegen_flags: <defaults>
</compile_context>

<pallas_src>
import functools
import math

import jax
import jax.numpy as jnp
from jax import lax
from jax.experimental import pallas as pl
from jax.experimental.pallas import tpu as pltpu


# ---------------------------------------------------------------------------
# Tile sizing (VMEM byte budget) and compiler-param helpers
# ---------------------------------------------------------------------------
_TARGET_BLOCK_BYTES = 2 * 1024 * 1024  # per-block data bytes at the input dtype


def _sublane_multiple(dtype):
    return {4: 8, 2: 16, 1: 32}.get(jnp.dtype(dtype).itemsize, 8)


def _round_down(x, m):
    return (x // m) * m


def _pick_lane_tile(s, c, itemsize):
    """Lane tile T (multiple of 128) for a (1, c, T) block, sized by VMEM budget."""
    if s < 128:
        return s  # tiny axis: single full-dim block
    target_elems = max(_TARGET_BLOCK_BYTES // itemsize, 128 * c)
    t = max(128, _round_down(target_elems // c, 128))
    return min(t, _round_down(s, 128))


def _pick_sublane_tile(rows, elems_per_row, itemsize, dtype):
    """Row tile (multiple of the dtype's sublane packing) sized by VMEM budget."""
    sub = _sublane_multiple(dtype)
    if rows < sub:
        return rows  # tiny axis: single full-dim block
    target_elems = max(_TARGET_BLOCK_BYTES // itemsize, sub * elems_per_row)
    t = max(sub, _round_down(target_elems // elems_per_row, sub))
    return min(t, _round_down(rows, sub))


def _vmem_limit_bytes(block_elems, itemsize):
    # Double-buffered in+out at the input dtype plus the per-block f32 working set,
    # with margin.  Clamp to [32 MiB, 48 MiB]: above the default scoped limits
    # (16 MiB v5e, 32 MiB v6e/v7x) and below v7x's 64 MiB physical VMEM.
    est = 4 * block_elems * itemsize + 4 * block_elems * 4
    return int(min(48 << 20, max(32 << 20, est + (8 << 20))))


# ---------------------------------------------------------------------------
# Kernels (all stats in float32; biased variance to match the PyTorch module)
# ---------------------------------------------------------------------------
def _ln_cf_sublane_kernel(x_ref, w_ref, b_ref, o_ref, *, eps, inv_c):
    # x_ref/o_ref: (1, C, T); w_ref/b_ref: (C, 1).  C on sublanes, T (>=128) on lanes.
    x = x_ref[0].astype(jnp.float32)                        # (C, T)
    u = jnp.sum(x, axis=0, keepdims=True) * inv_c           # (1, T)
    d = x - u
    s = jnp.sum(d * d, axis=0, keepdims=True) * inv_c       # (1, T) biased var
    a = lax.rsqrt(s + eps) * w_ref[...].astype(jnp.float32)  # (C, T)
    o_ref[0] = (d * a + b_ref[...].astype(jnp.float32)).astype(o_ref.dtype)


def _ln_cf_leading_kernel(x_ref, w_ref, b_ref, o_ref, *, eps, inv_c):
    # x_ref/o_ref: (1, C, Ts, 128); w_ref/b_ref: (C, 1, 1).  C is a leading
    # (non-vreg) axis: the C-reduction is plain VALU adds of dense (8,128) vregs.
    x = x_ref[0].astype(jnp.float32)                        # (C, Ts, 128)
    u = jnp.sum(x, axis=0) * inv_c                          # (Ts, 128)
    d = x - u
    s = jnp.sum(d * d, axis=0) * inv_c                      # (Ts, 128) biased var
    a = lax.rsqrt(s + eps) * w_ref[...].astype(jnp.float32)  # (C, Ts, 128)
    o_ref[0] = (d * a + b_ref[...].astype(jnp.float32)).astype(o_ref.dtype)


def _ln_cl_kernel(x_ref, w_ref, b_ref, o_ref, *, eps, inv_c):
    # x_ref/o_ref: (Tm, C); w_ref/b_ref: (1, C).  Reduce over the lane axis C.
    x = x_ref[...].astype(jnp.float32)
    u = jnp.sum(x, axis=-1, keepdims=True) * inv_c          # (Tm, 1)
    d = x - u
    s = jnp.sum(d * d, axis=-1, keepdims=True) * inv_c      # (Tm, 1) biased var
    a = lax.rsqrt(s + eps) * w_ref[...].astype(jnp.float32)  # (Tm, C)
    o_ref[...] = (d * a + b_ref[...].astype(jnp.float32)).astype(o_ref.dtype)


# ---------------------------------------------------------------------------
# channels_first wrapper
# ---------------------------------------------------------------------------
def layer_norm_channels_first(x, weight, bias, eps=1e-6):
    """x: (N, C, *spatial); normalize over C; per-channel affine weight/bias."""
    N, C = x.shape[0], x.shape[1]
    S = int(math.prod(x.shape[2:]))
    itemsize = jnp.dtype(x.dtype).itemsize
    sub = _sublane_multiple(x.dtype)

    use_leading_c = (C < sub) and (S >= 128) and (S % 128 == 0)

    if use_leading_c:
        # Small C: view as (N, C, S/128, 128) so C is a leading (non-vreg) axis.
        S128 = S // 128
        x_r = x.reshape(N, C, S128, 128)
        w_r = weight.reshape(C, 1, 1)
        b_r = bias.reshape(C, 1, 1)
        Ts = _pick_sublane_tile(S128, C * 128, itemsize, x.dtype)
        tiles = pl.cdiv(S128, Ts)
        block = (1, C, Ts, 128)
        block_elems = C * Ts * 128
        param_block = (C, 1, 1)
        if tiles >= N:   # larger parallel axis first -> balanced megacore sharding
            grid = (tiles, N)
            x_map = lambda t, n: (n, 0, t, 0)
            p_map = lambda t, n: (0, 0, 0)
        else:
            grid = (N, tiles)
            x_map = lambda n, t: (n, 0, t, 0)
            p_map = lambda n, t: (0, 0, 0)
        kernel = functools.partial(_ln_cf_leading_kernel, eps=float(eps), inv_c=1.0 / C)
    else:
        # General case: flatten spatial to a lane-dense axis; C on sublanes.
        x_r = x.reshape(N, C, S)
        w_r = weight.reshape(C, 1)
        b_r = bias.reshape(C, 1)
        T = _pick_lane_tile(S, C, itemsize)
        tiles = pl.cdiv(S, T)
        block = (1, C, T)
        block_elems = C * T
        param_block = (C, 1)
        if tiles >= N:
            grid = (tiles, N)
            x_map = lambda t, n: (n, 0, t)
            p_map = lambda t, n: (0, 0)
        else:
            grid = (N, tiles)
            x_map = lambda n, t: (n, 0, t)
            p_map = lambda n, t: (0, 0)
        kernel = functools.partial(_ln_cf_sublane_kernel, eps=float(eps), inv_c=1.0 / C)

    cost = pl.CostEstimate(
        flops=int(8 * N * C * S),
        transcendentals=int(N * S),
        bytes_accessed=int(2 * N * C * S * itemsize),
    )
    out_r = pl.pallas_call(
        kernel,
        out_shape=jax.ShapeDtypeStruct(x_r.shape, x.dtype),
        grid_spec=pltpu.PrefetchScalarGridSpec(
            num_scalar_prefetch=0,
            grid=grid,
            in_specs=[
                pl.BlockSpec(block, x_map),
                pl.BlockSpec(param_block, p_map),
                pl.BlockSpec(param_block, p_map),
            ],
            out_specs=pl.BlockSpec(block, x_map),
        ),
        compiler_params=pltpu.CompilerParams(
            dimension_semantics=("parallel", "parallel"),
            vmem_limit_bytes=_vmem_limit_bytes(block_elems, itemsize),
        ),
        cost_estimate=cost,
    )(x_r, w_r, b_r)
    return out_r.reshape(x.shape)


# ---------------------------------------------------------------------------
# channels_last wrapper
# ---------------------------------------------------------------------------
def layer_norm_channels_last(x, weight, bias, eps=1e-6):
    """x: (..., C); normalize over last dim C; affine over C."""
    C = x.shape[-1]
    M = int(math.prod(x.shape[:-1]))
    itemsize = jnp.dtype(x.dtype).itemsize
    padded_c = pl.cdiv(C, 128) * 128  # VMEM lane-padded width

    if padded_c > 3 * C:
        # Lane-sparse C (e.g. C=4): a (Tm, C) tile uses only C/128 of every lane,
        # VPU op and store slot, and inflates VMEM by 128/C via lane padding.
        # Two dense transpose passes (~3x HBM traffic) beat that, so route
        # through the lane-dense channels_first layout with M on the lane axis.
        x2 = x.reshape(M, C)
        out_t = layer_norm_channels_first(x2.T[None], weight, bias, eps)
        return out_t[0].T.reshape(x.shape)

    x2 = x.reshape(M, C)
    w2 = weight.reshape(1, C)
    b2 = bias.reshape(1, C)
    Tm = _pick_sublane_tile(M, padded_c, itemsize, x.dtype)
    tiles = pl.cdiv(M, Tm)

    cost = pl.CostEstimate(
        flops=int(8 * M * C),
        transcendentals=int(M),
        bytes_accessed=int(2 * M * C * itemsize),
    )
    out2 = pl.pallas_call(
        functools.partial(_ln_cl_kernel, eps=float(eps), inv_c=1.0 / C),
        out_shape=jax.ShapeDtypeStruct((M, C), x.dtype),
        grid_spec=pltpu.PrefetchScalarGridSpec(
            num_scalar_prefetch=0,
            grid=(tiles,),
            in_specs=[
                pl.BlockSpec((Tm, C), lambda i: (i, 0)),
                pl.BlockSpec((1, C), lambda i: (0, 0)),
                pl.BlockSpec((1, C), lambda i: (0, 0)),
            ],
            out_specs=pl.BlockSpec((Tm, C), lambda i: (i, 0)),
        ),
        compiler_params=pltpu.CompilerParams(
            dimension_semantics=("parallel",),
            vmem_limit_bytes=_vmem_limit_bytes(Tm * padded_c, itemsize),
        ),
        cost_estimate=cost,
    )(x2, w2, b2)
    return out2.reshape(x.shape)


# ---------------------------------------------------------------------------
# Module-style wrapper mirroring the PyTorch LayerNorm
# ---------------------------------------------------------------------------
class LayerNorm:
    def __init__(self, normalized_shape, eps=1e-6, data_format="channels_first"):
        if data_format not in ("channels_last", "channels_first"):
            raise NotImplementedError
        self.weight = jnp.ones((normalized_shape,), jnp.float32)
        self.bias = jnp.zeros((normalized_shape,), jnp.float32)
        self.eps = eps
        self.data_format = data_format

    def __call__(self, x):
        if self.data_format == "channels_last":
            return layer_norm_channels_last(x, self.weight, self.bias, self.eps)
        return layer_norm_channels_first(x, self.weight, self.bias, self.eps)


# ---------------------------------------------------------------------------
# Self-test
# ---------------------------------------------------------------------------
if __name__ == "__main__":
    key = jax.random.PRNGKey(0)
    keys = jax.random.split(key, 16)
    eps = 1e-6

    def ref_cf(x, w, b):
        u = x.mean(axis=1, keepdims=True)
        s = ((x - u) ** 2).mean(axis=1, keepdims=True)
        y = (x - u) / jnp.sqrt(s + eps)
        shp = (1, -1) + (1,) * (x.ndim - 2)
        return w.reshape(shp) * y + b.reshape(shp)

    def ref_cl(x, w, b):
        u = x.mean(axis=-1, keepdims=True)
        s = ((x - u) ** 2).mean(axis=-1, keepdims=True)
        return (x - u) / jnp.sqrt(s + eps) * w + b

    def check(out, ref, name):
        assert out.shape == ref.shape and out.dtype == ref.dtype, name
        assert jnp.allclose(out, ref, atol=1e-4, rtol=1e-4), name

    def run_cf(kx, kw, kb, shape):
        C = shape[1]
        w = jax.random.normal(kw, (C,), jnp.float32) * 0.5 + 1.0
        b = jax.random.normal(kb, (C,), jnp.float32) * 0.1
        x = jax.random.normal(kx, shape, jnp.float32)
        ln = LayerNorm(C, eps=eps, data_format="channels_first")
        ln.weight, ln.bias = w, b
        out = jax.block_until_ready(ln(x))
        check(out, ref_cf(x, w, b), f"channels_first {shape}")

    def run_cl(kx, kw, kb, shape):
        C = shape[-1]
        w = jax.random.normal(kw, (C,), jnp.float32) * 0.5 + 1.0
        b = jax.random.normal(kb, (C,), jnp.float32) * 0.1
        x = jax.random.normal(kx, shape, jnp.float32)
        ln = LayerNorm(C, eps=eps, data_format="channels_last")
        ln.weight, ln.bias = w, b
        out = jax.block_until_ready(ln(x))
        check(out, ref_cl(x, w, b), f"channels_last {shape}")

    # channels_first: small C -> leading-C (1, C, Ts, 128) path
    run_cf(keys[0], keys[1], keys[2], (2, 4, 16, 16))
    # channels_first: moderate C -> lane-dense (1, C, T) sublane path
    run_cf(keys[3], keys[4], keys[5], (2, 32, 16, 16))
    # channels_first: odd spatial size (S < 128) -> full-dim block tail path
    run_cf(keys[6], keys[7], keys[8], (2, 8, 5, 7))
    # channels_last: lane-dense C (multiple of 128) -> direct (Tm, C) path
    run_cl(keys[9], keys[10], keys[11], (2, 16, 16, 128))
    # channels_last: moderate non-128 C -> direct path (padded-aware budget)
    run_cl(keys[12], keys[13], keys[14], (2, 8, 8, 96))
    # channels_last: tiny C -> rerouted through the lane-dense channels_first layout
    run_cl(keys[15], keys[1], keys[2], (2, 16, 16, 4))

    print("KERNEL_OK")
</pallas_src>

<mosaic_0001>
module attributes {stable_mosaic.version = 11 : i64} {
  func.func @_ln_cf_leading_kernel(%arg0: i32, %arg1: i32, %arg2: memref<1x4x2x128xf32, #tpu.memory_space<vmem>>, %arg3: memref<4x1x1xf32, #tpu.memory_space<vmem>>, %arg4: memref<4x1x1xf32, #tpu.memory_space<vmem>>, %arg5: memref<1x4x2x128xf32, #tpu.memory_space<vmem>>) attributes {dimension_semantics = [#tpu.dimension_semantics<parallel>, #tpu.dimension_semantics<parallel>], iteration_bounds = array<i64: 2, 1>, scalar_prefetch = 0 : i64, scratch_operands = 0 : i64, tpu.core_type = #tpu.core_type<tc>, window_params = [{transform_indices = @transform_0, window_bounds = array<i64: 1, 4, 2, 128>}, {pipeline_mode = #tpu.pipeline_mode<synchronous>, transform_indices = @transform_1, window_bounds = array<i64: 4, 1, 1>}, {pipeline_mode = #tpu.pipeline_mode<synchronous>, transform_indices = @transform_2, window_bounds = array<i64: 4, 1, 1>}, {transform_indices = @transform_3, window_bounds = array<i64: 1, 4, 2, 128>}]} {
    %c0 = arith.constant 0 : index
    %c0_0 = arith.constant 0 : index
    %c0_1 = arith.constant 0 : index
    %c0_2 = arith.constant 0 : index
    %0 = vector.load %arg2[%c0, %c0_0, %c0_1, %c0_2] : memref<1x4x2x128xf32, #tpu.memory_space<vmem>>, vector<1x4x2x128xf32>
    %1 = vector.shape_cast %0 : vector<1x4x2x128xf32> to vector<4x2x128xf32>
    %cst = arith.constant dense<0.000000e+00> : vector<2x128xf32>
    %2 = vector.multi_reduction <add>, %1, %cst [0] : vector<4x2x128xf32> to vector<2x128xf32>
    %cst_3 = arith.constant 2.500000e-01 : f32
    %3 = vector.broadcast %cst_3 : f32 to vector<2x128xf32>
    %4 = arith.mulf %2, %3 : vector<2x128xf32>
    %5 = vector.shape_cast %4 : vector<2x128xf32> to vector<1x2x128xf32>
    %6 = vector.broadcast %5 : vector<1x2x128xf32> to vector<4x2x128xf32>
    %7 = arith.subf %1, %6 : vector<4x2x128xf32>
    %8 = arith.mulf %7, %7 : vector<4x2x128xf32>
    %cst_4 = arith.constant dense<0.000000e+00> : vector<2x128xf32>
    %9 = vector.multi_reduction <add>, %8, %cst_4 [0] : vector<4x2x128xf32> to vector<2x128xf32>
    %cst_5 = arith.constant 2.500000e-01 : f32
    %10 = vector.broadcast %cst_5 : f32 to vector<2x128xf32>
    %11 = arith.mulf %9, %10 : vector<2x128xf32>
    %cst_6 = arith.constant 9.99999997E-7 : f32
    %12 = vector.broadcast %cst_6 : f32 to vector<2x128xf32>
    %13 = arith.addf %11, %12 : vector<2x128xf32>
    %14 = math.rsqrt %13 : vector<2x128xf32>
    %c0_7 = arith.constant 0 : index
    %c0_8 = arith.constant 0 : index
    %c0_9 = arith.constant 0 : index
    %15 = vector.load %arg3[%c0_7, %c0_8, %c0_9] : memref<4x1x1xf32, #tpu.memory_space<vmem>>, vector<4x1x1xf32>
    %16 = vector.shape_cast %14 : vector<2x128xf32> to vector<1x2x128xf32>
    %17 = vector.broadcast %16 : vector<1x2x128xf32> to vector<4x2x128xf32>
    %18 = vector.broadcast %15 : vector<4x1x1xf32> to vector<4x2x128xf32>
    %19 = arith.mulf %17, %18 : vector<4x2x128xf32>
    %20 = arith.mulf %7, %19 : vector<4x2x128xf32>
    %c0_10 = arith.constant 0 : index
    %c0_11 = arith.constant 0 : index
    %c0_12 = arith.constant 0 : index
    %21 = vector.load %arg4[%c0_10, %c0_11, %c0_12] : memref<4x1x1xf32, #tpu.memory_space<vmem>>, vector<4x1x1xf32>
    %22 = vector.broadcast %21 : vector<4x1x1xf32> to vector<4x2x128xf32>
    %23 = arith.addf %20, %22 : vector<4x2x128xf32>
    %c0_13 = arith.constant 0 : index
    %c0_14 = arith.constant 0 : index
    %c0_15 = arith.constant 0 : index
    %c0_16 = arith.constant 0 : index
    %24 = vector.load %arg5[%c0_13, %c0_14, %c0_15, %c0_16] : memref<1x4x2x128xf32, #tpu.memory_space<vmem>>, vector<1x4x2x128xf32>
    %25 = vector.shape_cast %24 : vector<1x4x2x128xf32> to vector<4x2x128xf32>
    %26 = vector.shape_cast %23 : vector<4x2x128xf32> to vector<1x4x2x128xf32>
    tpu.vector_store %arg5[%c0_13, %c0_14, %c0_15, %c0_16], %26 {strides = array<i32>} : memref<1x4x2x128xf32, #tpu.memory_space<vmem>>, vector<1x4x2x128xf32>,
    return
  }
  func.func @transform_0(%arg0: i32, %arg1: i32) -> (i32, i32, i32, i32) {
    %c0_i32 = arith.constant 0 : i32
    %c0_i32_0 = arith.constant 0 : i32
    %c0_i32_1 = arith.constant 0 : i32
    return %arg0, %c0_i32, %arg1, %c0_i32_0 : i32, i32, i32, i32
  }
  func.func @transform_1(%arg0: i32, %arg1: i32) -> (i32, i32, i32) {
    %c0_i32 = arith.constant 0 : i32
    %c0_i32_0 = arith.constant 0 : i32
    %c0_i32_1 = arith.constant 0 : i32
    %c0_i32_2 = arith.constant 0 : i32
    return %c0_i32, %c0_i32_0, %c0_i32_1 : i32, i32, i32
  }
  func.func @transform_2(%arg0: i32, %arg1: i32) -> (i32, i32, i32) {
    %c0_i32 = arith.constant 0 : i32
    %c0_i32_0 = arith.constant 0 : i32
    %c0_i32_1 = arith.constant 0 : i32
    %c0_i32_2 = arith.constant 0 : i32
    return %c0_i32, %c0_i32_0, %c0_i32_1 : i32, i32, i32
  }
  func.func @transform_3(%arg0: i32, %arg1: i32) -> (i32, i32, i32, i32) {
    %c0_i32 = arith.constant 0 : i32
    %c0_i32_0 = arith.constant 0 : i32
    %c0_i32_1 = arith.constant 0 : i32
    return %arg0, %c0_i32, %arg1, %c0_i32_0 : i32, i32, i32, i32
  }
}

</mosaic_0001>

<llo_original>
// kernel: tpu_custom_call.1
$region0: #{tpu_custom_call.1}
  #allocation0 [shape = 'u32[]', space=smem, size = 0x4, offset = 0x4, fixed_abs, tag = 'smem constant byte address 0x4 - core index']
  #allocation1 [shape = 'u32[72,128]{1,0:T(1,128)}', space=vmem, size = 0x9000, scoped, tag = 'internal scratch']
  %s0 = inlined_call_operand.hbm [shape: f32[2,4,2,128], index: 0, kind: input, shape index: {}]
  %s1 = inlined_call_operand.vmem [shape: f32[4,1,1], index: 1, kind: input, shape index: {}]
  %s2 = inlined_call_operand.vmem [shape: f32[4,1,1], index: 2, kind: input, shape index: {}]
  %s3 = inlined_call_operand.hbm [shape: f32[2,4,2,128], index: 3, kind: output, shape index: {}]
  %s4 = sld [smem:[#allocation0]]
  $region49: #{tpu_custom_call.1} parent=0
    _
  %s6 = ssub.s32 1, %s4
  %s7 = scalar_select 0, %s6, %s4
  $region1: #{tpu_custom_call.1} parent=0
    #allocation2 [shape = 'u8[8192]{0}', space=vmem, size = 0x2000, scoped, tag = 'input window, operand 0']
    #allocation3 [shape = 's32[2]{0}', space=sflag, size = 0x8, scoped, tag = 'scoped memory for tpu_custom_call.1']
    #allocation4 [shape = 's32[2]{0}', space=sflag, size = 0x8, scoped, tag = 'scoped memory for tpu_custom_call.1']
    #allocation5 [shape = 'u8[8192]{0}', space=vmem, size = 0x2000, scoped, tag = 'output window, operand 0']
    %8 = vsyncpa [#allocation3], 0
    %s9 = scalar_lea.sflag [#allocation3], 1
    %10 = vsyncpa %s9, 0
    %11 = vsyncpa [#allocation4], 0
    %s12 = scalar_lea.sflag [#allocation4], 1
    %13 = vsyncpa %s12, 0
    loop: start=0, step=1, limit=4
    $region2: #{tpu_custom_call.1} parent=1 // loop_pre_header
      _
    $region3: #{tpu_custom_call.1} parent=1 // loop_header
      %s15 = sphi 0, %s19
      %p16 = scmp.ge.s32.totalorder %s15, 4
      %s22 = sphi 0, %s34
      %s23 = sphi 0, %s30
      %s24 = sphi 0, %s22
      %s25 = sphi 0, %s23
      %s26 = sphi 0, %s24
      %s27 = sphi 0, %s25
      %s39 = sphi 0, %s41
      %s42 = sphi 0, %s39
      %s43 = sphi 0, %s42
      %s59 = sphi 0, %s43
      %s63 = sphi 0, %s63
      %s65 = sphi 0, %s63
      %s66 = sphi 0, %s65
      %s80 = sphi 0, %s66
      %s84 = sphi 0, %s84
      %s86 = sphi 0, %s84
      %s87 = sphi 0, %s86
      %s101 = sphi 0, %s87
      %s109 = sphi 0, %s111
      %s112 = sphi 0, %s109
      %s113 = sphi 0, %s112
      %s129 = sphi 0, %s113
    $region4: #{tpu_custom_call.1} parent=1 // loop_header_branch
      %18 = sbr.rel (%p16) target = $region8
    $region5: #{tpu_custom_call.1} parent=1 // loop_body
      %s20 = ssub.s32 %s15, 1
      %s21 = ssub.s32 %s15, 2
      %s28 = sadd.s32 1, %s23
      %p29 = scmp.ge.s32.totalorder %s28, 1
      %s30 = scalar_select %p29, 0, %s28
      %s31 = sadd.s32 1, %s22
      %s32 = scalar_select %p29, %s31, %s22
      %p33 = scmp.ge.s32.totalorder %s32, 2
      %s34 = scalar_select %p33, 0, %s32
      %s35 = ssub.s32 %s22, %s34
      %s36 = ssub.s32 %s23, %s30
      %s37 = sor.u32 %s35, %s36
      %p38 = scmp.eq.s32.totalorder %s37, 0
      %s40 = sadd.s32 %s39, 1
      %s41 = scalar_select %p38, %s39, %s40
      %p44 = pneg %p38
      %p45 = scmp.eq.s32.totalorder %s15, 1
      %p46 = por %p44, %p45
      %p47 = scmp.ne.s32.totalorder %s39, %s42
      %p48 = scmp.eq.s32.totalorder %s15, 0
      %p49 = por %p47, %p48
      %p50 = scmp.ne.s32.totalorder %s39, %s42
      %p51 = scmp.eq.s32.totalorder %s20, 1
      %p52 = por %p50, %p51
      %p53 = scmp.ne.s32.totalorder %s42, %s43
      %p54 = scmp.eq.s32.totalorder %s20, 0
      %p55 = por %p53, %p54
      %p56 = scmp.ne.s32.totalorder %s42, %s43
      %p57 = scmp.eq.s32.totalorder %s21, 1
      %p58 = por %p56, %p57
      %p60 = scmp.ne.s32.totalorder %s43, %s59
      %p61 = scmp.eq.s32.totalorder %s21, 0
      %p62 = por %p60, %p61
      %s64 = sadd.s32 %s63, 1
      %p67 = scmp.eq.s32.totalorder %s15, 1
      %p68 = scmp.ne.s32.totalorder %s63, %s65
      %p69 = scmp.eq.s32.totalorder %s15, 0
      %p70 = por %p68, %p69
      %p71 = scmp.ne.s32.totalorder %s63, %s65
      %p72 = scmp.eq.s32.totalorder %s20, 1
      %p73 = por %p71, %p72
      %p74 = scmp.ne.s32.totalorder %s65, %s66
      %p75 = scmp.eq.s32.totalorder %s20, 0
      %p76 = por %p74, %p75
      %p77 = scmp.ne.s32.totalorder %s65, %s66
      %p78 = scmp.eq.s32.totalorder %s21, 1
      %p79 = por %p77, %p78
      %p81 = scmp.ne.s32.totalorder %s66, %s80
      %p82 = scmp.eq.s32.totalorder %s21, 0
      %p83 = por %p81, %p82
      %s85 = sadd.s32 %s84, 1
      %p88 = scmp.eq.s32.totalorder %s15, 1
      %p89 = scmp.ne.s32.totalorder %s84, %s86
      %p90 = scmp.eq.s32.totalorder %s15, 0
      %p91 = por %p89, %p90
      %p92 = scmp.ne.s32.totalorder %s84, %s86
      %p93 = scmp.eq.s32.totalorder %s20, 1
      %p94 = por %p92, %p93
      %p95 = scmp.ne.s32.totalorder %s86, %s87
      %p96 = scmp.eq.s32.totalorder %s20, 0
      %p97 = por %p95, %p96
      %p98 = scmp.ne.s32.totalorder %s86, %s87
      %p99 = scmp.eq.s32.totalorder %s21, 1
      %p100 = por %p98, %p99
      %p102 = scmp.ne.s32.totalorder %s87, %s101
      %p103 = scmp.eq.s32.totalorder %s21, 0
      %p104 = por %p102, %p103
      %s105 = ssub.s32 %s22, %s34
      %s106 = ssub.s32 %s23, %s30
      %s107 = sor.u32 %s105, %s106
      %p108 = scmp.eq.s32.totalorder %s107, 0
      %s110 = sadd.s32 %s109, 1
      %s111 = scalar_select %p108, %s109, %s110
      %p114 = pneg %p108
      %p115 = scmp.eq.s32.totalorder %s15, 1
      %p116 = por %p114, %p115
      %p117 = scmp.ne.s32.totalorder %s109, %s112
      %p118 = scmp.eq.s32.totalorder %s15, 0
      %p119 = por %p117, %p118
      %p120 = scmp.ne.s32.totalorder %s109, %s112
      %p121 = scmp.eq.s32.totalorder %s20, 1
      %p122 = por %p120, %p121
      %p123 = scmp.ne.s32.totalorder %s112, %s113
      %p124 = scmp.eq.s32.totalorder %s20, 0
      %p125 = por %p123, %p124
      %p126 = scmp.ne.s32.totalorder %s112, %s113
      %p127 = scmp.eq.s32.totalorder %s21, 1
      %p128 = por %p126, %p127
      %p130 = scmp.ne.s32.totalorder %s113, %s129
      %p131 = scmp.eq.s32.totalorder %s21, 0
      %p132 = por %p130, %p131
      %p133 = scmp.le.s32.totalorder 1, %s15
      %p134 = scmp.lt.s32.totalorder %s15, 3
      %p135 = pnand %p133, %p134
      %p136 = pneg %p135
      // Predicated region
      $region9: #{tpu_custom_call.1} parent=5 // pred_check
        _
      $region10: #{tpu_custom_call.1} parent=5 // pred_check_branch
        %138 = sbr.rel (%p135) target = $region12
      $region11: #{tpu_custom_call.1} parent=5 // pred_region
        %s139 = ssub.s32 %s15, 1
        // Predicated region
        $region13: #{tpu_custom_call.1} parent=11 // pred_check
          %p140 = pneg %p76
        $region14: #{tpu_custom_call.1} parent=11 // pred_check_branch
          %142 = sbr.rel (%p140) target = $region16
        $region15: #{tpu_custom_call.1} parent=11 // pred_region
          _
        $region16: #{tpu_custom_call.1} parent=11 // pred_fallthru
          _
        // Predicated region
        $region17: #{tpu_custom_call.1} parent=11 // pred_check
          %p143 = pneg %p97
        $region18: #{tpu_custom_call.1} parent=11 // pred_check_branch
          %145 = sbr.rel (%p143) target = $region20
        $region19: #{tpu_custom_call.1} parent=11 // pred_region
          _
        $region20: #{tpu_custom_call.1} parent=11 // pred_fallthru
          _
      $region12: #{tpu_custom_call.1} parent=5 // pred_fallthru
        _
      %p146 = scmp.lt.s32.totalorder %s15, 2
      // Predicated region
      $region21: #{tpu_custom_call.1} parent=5 // pred_check
        %p147 = pneg %p146
      $region22: #{tpu_custom_call.1} parent=5 // pred_check_branch
        %149 = sbr.rel (%p147) target = $region24
      $region23: #{tpu_custom_call.1} parent=5 // pred_region
        // Predicated region
        $region25: #{tpu_custom_call.1} parent=23 // pred_check
          %p150 = pneg %p49
        $region26: #{tpu_custom_call.1} parent=23 // pred_check_branch
          %152 = sbr.rel (%p150) target = $region28
        $region27: #{tpu_custom_call.1} parent=23 // pred_region
          %s153 = sand.u32 %s39, 1
          %s154 = scalar_lea.sflag [#allocation3], %s153
          %s155 = sand.u32 %s39, 1
          %s156 = smul.addr %s155, 8
          %s157 = scalar_lea.vmem [#allocation2], %s156
          %159 = vsyncadd %s154, 0
          %s160 = smul.addr %s22, 4
          %s161 = sadd.s32 %s23, %s160
          %s162 = smul.addr %s161, 2
          %s163 = scalar_lea.hbm %s0, %s162
          %s164 = sshll.u32 %s163, 4
          %s165 = int_to_ptr.hbm [resolvable:$true] %s164
          %s166 = sshll.u32 %s157, 4
          %s167 = int_to_ptr.vmem [resolvable:$true] %s166
          %172 = dma.hbm_to_vmem [thread:$0]  %s165, 128, %s167, %s154, 32, 32, 2
        $region28: #{tpu_custom_call.1} parent=23 // pred_fallthru
          _
      $region24: #{tpu_custom_call.1} parent=5 // pred_fallthru
        _
      %p173 = scmp.le.s32.totalorder 1, %s15
      %p174 = scmp.lt.s32.totalorder %s15, 3
      %p175 = pnand %p173, %p174
      %p176 = pneg %p175
      // Predicated region
      $region29: #{tpu_custom_call.1} parent=5 // pred_check
        _
      $region30: #{tpu_custom_call.1} parent=5 // pred_check_branch
        %178 = sbr.rel (%p175) target = $region32
      $region31: #{tpu_custom_call.1} parent=5 // pred_region
        %s179 = ssub.s32 %s15, 1
        %s180 = sand.u32 %s42, 1
        %s181 = scalar_lea.sflag [#allocation3], %s180
        %s182 = sand.u32 %s42, 1
        %s183 = smul.addr %s182, 8
        %s184 = scalar_lea.vmem [#allocation2], %s183
        // Predicated region
        $region33: #{tpu_custom_call.1} parent=31 // pred_check
          %p185 = pneg %p55
        $region34: #{tpu_custom_call.1} parent=31 // pred_check_branch
          %187 = sbr.rel (%p185) target = $region36
        $region35: #{tpu_custom_call.1} parent=31 // pred_region
          %189 = dma.done %s181, 128
        $region36: #{tpu_custom_call.1} parent=31 // pred_fallthru
          _
        %s190 = sand.u32 %s42, 1
        %s191 = scalar_lea.sflag [#allocation3], %s190
        %s192 = sand.u32 %s42, 1
        %s193 = smul.addr %s192, 8
        %s194 = scalar_lea.vmem [#allocation2], %s193
        %p195 = pneg %p55
        %p196 = pneg %p52
        %p197 = pneg %p76
        %p198 = pneg %p73
        %p199 = pneg %p97
        %p200 = pneg %p94
        %p201 = pneg %p125
        %p202 = pneg %p122
        %s203 = sand.u32 %s112, 1
        %s204 = scalar_lea.sflag [#allocation4], %s203
        %s205 = sand.u32 %s112, 1
        %s206 = smul.addr %s205, 8
        %s207 = scalar_lea.vmem [#allocation5], %s206
        %v208 = vld [vmem:[%s184] sm:$0x3]
        %v209 = vld [vmem:[%s184 + $0x2] sm:$0x3]
        %v210 = vld [vmem:[%s184 + $0x4] sm:$0x3]
        %v211 = vld [vmem:[%s184 + $0x6] sm:$0x3]
        %vm212 = vcmask 1041408
        %v213 = vsel %vm212, %v208, 0.0
        %v214 = vsel %vm212, %v209, 0.0
        %v215 = vadd.f32 %v213, %v214
        %v216 = vsel %vm212, %v210, 0.0
        %v217 = vadd.f32 %v215, %v216
        %v218 = vsel %vm212, %v211, 0.0
        %v219 = vadd.f32 %v217, %v218
        %v220 = vmul.f32 %v219, 0.25
        %v221 = vsub.f32 %v208, %v220
        %v222 = vsub.f32 %v209, %v220
        %v223 = vsub.f32 %v210, %v220
        %v224 = vsub.f32 %v211, %v220
        %v225 = vmul.f32 %v221, %v221
        %v226 = vmul.f32 %v222, %v222
        %v227 = vmul.f32 %v223, %v223
        %v228 = vmul.f32 %v224, %v224
        %v229 = vsel %vm212, %v225, 0.0
        %v230 = vsel %vm212, %v226, 0.0
        %v231 = vadd.f32 %v229, %v230
        %v232 = vsel %vm212, %v227, 0.0
        %v233 = vadd.f32 %v231, %v232
        %v234 = vsel %vm212, %v228, 0.0
        %v235 = vadd.f32 %v233, %v234
        %v236 = vmul.f32 %v235, 0.25
        %v237 = vadd.f32 %v236, 1e-06
        %v238 = vrsqrt.pop %v237
        %v239 = vmul.f32 %v238, %v237
        %v240 = vmul.f32 %v239, %v238
        %v241 = vmul.f32 0.5, %v240
        %v242 = vsub.f32 1.5, %v241
        %v243 = vmul.f32 %v238, %v242
        %vm244 = vweird.f32 %v237
        %vm245 = vweird.f32 %v238
        %vm246 = vmor %vm244, %vm245
        %v247 = vsel %vm246, %v238, %v243
        %v248 = vld [vmem:[%s1] sm:$0x1]
        %v249 = vld [vmem:[%s1 + $0x1] sm:$0x1]
        %v250 = vld [vmem:[%s1 + $0x2] sm:$0x1]
        %v251 = vld [vmem:[%s1 + $0x3] sm:$0x1]
        %v256 = vperm.slane %v248, 0
        %v257 = vperm.slane %v249, 0
        %v258 = vperm.slane %v250, 0
        %v259 = vperm.slane %v251, 0
        %260 = vset.pattern.permute.xlu0 0
        %261 = vperm.xlu0 %260, %v256
        %v262 = vpop.permute.xlu0 %261
        %264 = vset.pattern.permute.xlu0 0
        %265 = vperm.xlu0 %264, %v257
        %v266 = vpop.permute.xlu0 %265
        %268 = vset.pattern.permute.xlu0 0
        %269 = vperm.xlu0 %268, %v258
        %v270 = vpop.permute.xlu0 %269
        %272 = vset.pattern.permute.xlu0 0
        %273 = vperm.xlu0 %272, %v259
        %v274 = vpop.permute.xlu0 %273
        %v276 = vmul.f32 %v247, %v262
        %v277 = vmul.f32 %v247, %v266
        %v278 = vmul.f32 %v247, %v270
        %v279 = vmul.f32 %v247, %v274
        %v280 = vmul.f32 %v221, %v276
        %v281 = vmul.f32 %v222, %v277
        %v282 = vmul.f32 %v223, %v278
        %v283 = vmul.f32 %v224, %v279
        %v284 = vld [vmem:[%s2] sm:$0x1]
        %v285 = vld [vmem:[%s2 + $0x1] sm:$0x1]
        %v286 = vld [vmem:[%s2 + $0x2] sm:$0x1]
        %v287 = vld [vmem:[%s2 + $0x3] sm:$0x1]
        %v292 = vperm.slane %v284, 0
        %v293 = vperm.slane %v285, 0
        %v294 = vperm.slane %v286, 0
        %v295 = vperm.slane %v287, 0
        %296 = vset.pattern.permute.xlu0 0
        %297 = vperm.xlu0 %296, %v292
        %v298 = vpop.permute.xlu0 %297
        %300 = vset.pattern.permute.xlu0 0
        %301 = vperm.xlu0 %300, %v293
        %v302 = vpop.permute.xlu0 %301
        %304 = vset.pattern.permute.xlu0 0
        %305 = vperm.xlu0 %304, %v294
        %v306 = vpop.permute.xlu0 %305
        %308 = vset.pattern.permute.xlu0 0
        %309 = vperm.xlu0 %308, %v295
        %v310 = vpop.permute.xlu0 %309
        %v312 = vadd.f32 %v280, %v298
        %v313 = vadd.f32 %v281, %v302
        %v314 = vadd.f32 %v282, %v306
        %v315 = vadd.f32 %v283, %v310
        %316 = vst [vmem:[%s207] sm:$0x3] %v312
        %317 = vst [vmem:[%s207 + $0x2] sm:$0x3] %v313
        %318 = vst [vmem:[%s207 + $0x4] sm:$0x3] %v314
        %319 = vst [vmem:[%s207 + $0x6] sm:$0x3] %v315
        %s320 = sand.u32 %s112, 1
        %s321 = scalar_lea.sflag [#allocation4], %s320
        %s322 = sand.u32 %s112, 1
        %s323 = smul.addr %s322, 8
        %s324 = scalar_lea.vmem [#allocation5], %s323
        // Predicated region
        $region37: #{tpu_custom_call.1} parent=31 // pred_check
          %p325 = pneg %p122
        $region38: #{tpu_custom_call.1} parent=31 // pred_check_branch
          %327 = sbr.rel (%p325) target = $region40
        $region39: #{tpu_custom_call.1} parent=31 // pred_region
          %329 = vsyncadd %s321, 0
          %s330 = smul.addr %s24, 4
          %s331 = sadd.s32 %s25, %s330
          %s332 = smul.addr %s331, 2
          %s333 = scalar_lea.hbm %s3, %s332
          %s334 = sshll.u32 %s324, 4
          %s335 = int_to_ptr.vmem [resolvable:$true] %s334
          %s336 = sshll.u32 %s333, 4
          %s337 = int_to_ptr.hbm [resolvable:$true] %s336
          %342 = dma.vmem_to_hbm [thread:$0]  %s335, 128, %s337, %s321, 32, 32, 2
        $region40: #{tpu_custom_call.1} parent=31 // pred_fallthru
          _
      $region32: #{tpu_custom_call.1} parent=5 // pred_fallthru
        _
      %p343 = scmp.le.s32.totalorder 2, %s15
      // Predicated region
      $region41: #{tpu_custom_call.1} parent=5 // pred_check
        %p344 = pneg %p343
      $region42: #{tpu_custom_call.1} parent=5 // pred_check_branch
        %346 = sbr.rel (%p344) target = $region44
      $region43: #{tpu_custom_call.1} parent=5 // pred_region
        %s347 = ssub.s32 %s15, 2
        // Predicated region
        $region45: #{tpu_custom_call.1} parent=43 // pred_check
          %p348 = pneg %p128
        $region46: #{tpu_custom_call.1} parent=43 // pred_check_branch
          %350 = sbr.rel (%p348) target = $region48
        $region47: #{tpu_custom_call.1} parent=43 // pred_region
          %s351 = sand.u32 %s113, 1
          %s352 = scalar_lea.sflag [#allocation4], %s351
          %s353 = sand.u32 %s113, 1
          %s354 = smul.addr %s353, 8
          %s355 = scalar_lea.vmem [#allocation5], %s354
          %357 = dma.done %s352, 128
        $region48: #{tpu_custom_call.1} parent=43 // pred_fallthru
          _
      $region44: #{tpu_custom_call.1} parent=5 // pred_fallthru
        _
    $region6: #{tpu_custom_call.1} parent=1 // loop_footer
      %s19 = sadd.s32 1, %s15
    $region7: #{tpu_custom_call.1} parent=1 // loop_footer_branch
      %14 = sbr.rel target = $region3
    $region8: #{tpu_custom_call.1} parent=1 // loop_exit
      _
    %358 = vsyncpa [#allocation3], 1
    %s359 = scalar_lea.sflag [#allocation3], 1
    %360 = vsyncpa %s359, 1
    %361 = vsyncpa [#allocation4], 1
    %s362 = scalar_lea.sflag [#allocation4], 1
    %363 = vsyncpa %s362, 1

</llo_original>
